<compile_context>
chip_gen: v5e
topology: v5e:2x2
jax: 0.10.0
libtpu: 0.0.40
codegen_flags: <defaults>
</compile_context>

<pallas_src>
import functools

import jax
import jax.numpy as jnp
from jax.experimental import pallas as pl
from jax.experimental.pallas import tpu as pltpu


# -----------------------------------------------------------------------------
# Phase 1: stream image tiles, accumulate GAP; on the last tile run the
# classifier head (logits -> softmax winner) and gather the winning fc row.
# -----------------------------------------------------------------------------
def cam_head_kernel(img_ref, convw_ref, convb_ref, fcw_ref, fcb_ref,
                    w_ref, cls_ref, score_ref, gap_acc, *, inv_hw):
    t = pl.program_id(0)

    @pl.when(t == 0)
    def _init():
        gap_acc[...] = jnp.zeros_like(gap_acc)

    # feat tile = ReLU(conv_w' @ x + b') ; preprocess already folded into w'/b'.
    feat = jnp.dot(convw_ref[...], img_ref[...],
                   preferred_element_type=jnp.float32)            # (Cf, THW) f32
    feat = jnp.maximum(feat + convb_ref[...], 0.0)
    gap_acc[...] += jnp.sum(feat, axis=1, keepdims=True)          # lane reduce -> (Cf, 1)

    @pl.when(t == pl.num_programs(0) - 1)
    def _finalize():
        gap = gap_acc[...] * inv_hw                                # (Cf, 1)
        # Column-oriented head: one tiny (NC,Cf)@(Cf,1) dot, once per image.
        logits = jnp.dot(fcw_ref[...], gap,
                         preferred_element_type=jnp.float32) + fcb_ref[...]   # (NC,1)
        m = jnp.max(logits, axis=0, keepdims=True)                 # (1,1)
        e = jnp.exp(logits - m)
        denom = jnp.sum(e, axis=0, keepdims=True)                  # (1,1)
        # softmax winner's probability = exp(0) / denom.
        score_ref[...] = 1.0 / denom

        # argmax (first max); clamp so a NaN pathology can never index OOB.
        nc = logits.shape[0]
        sub_idx = jax.lax.broadcasted_iota(jnp.int32, logits.shape, 0)
        masked = jnp.where(logits == m, sub_idx, nc)
        cls_ref[...] = jnp.minimum(jnp.min(masked, axis=0, keepdims=True), nc - 1)

        # Scalar form for the dynamic sublane gather (no one-hot MXU matmul).
        cls = jnp.minimum(jnp.min(masked), nc - 1)
        w_ref[...] = fcw_ref[pl.ds(cls, 1), :]                     # (1, Cf)


# -----------------------------------------------------------------------------
# Phase 2: recompute the cheap folded conv per tile, emit saliency tiles and a
# carried global min/max (so the epilogue needs no extra full-HW reduce pass).
# -----------------------------------------------------------------------------
def cam_saliency_kernel(img_ref, convw_ref, convb_ref, wcol_ref,
                        sal_ref, smin_ref, smax_ref, min_acc, max_acc):
    t = pl.program_id(0)

    @pl.when(t == 0)
    def _init():
        min_acc[...] = jnp.full(min_acc.shape, jnp.inf, min_acc.dtype)
        max_acc[...] = jnp.full(max_acc.shape, -jnp.inf, max_acc.dtype)

    feat = jnp.dot(convw_ref[...], img_ref[...],
                   preferred_element_type=jnp.float32)             # (Cf, THW) f32
    feat = jnp.maximum(feat + convb_ref[...], 0.0)
    # M=1 saliency row as a VPU broadcast-multiply + XLU sublane reduce;
    # keeps the MXU out of an M=1 matmul (which would pad M up to 128/256).
    sal = jnp.maximum(jnp.sum(wcol_ref[...] * feat, axis=0, keepdims=True), 0.0)
    sal_ref[...] = sal                                             # (1, THW)

    min_acc[...] = jnp.minimum(min_acc[...], jnp.min(sal, axis=1, keepdims=True))
    max_acc[...] = jnp.maximum(max_acc[...], jnp.max(sal, axis=1, keepdims=True))

    @pl.when(t == pl.num_programs(0) - 1)
    def _finalize():
        smin_ref[...] = min_acc[...]
        smax_ref[...] = max_acc[...]


def _pick_tile_hw(hw, cap=8192):
    if hw % 128 != 0:
        return hw                      # fall back to a single full-width block
    t = min(hw, cap)
    t -= t % 128
    while hw % t != 0:
        t -= 128
    return t


def class_activation_map(image_chw, mean, std, conv_w, fc_w, fc_b, *, tile_hw=None):
    """CAM forward pass.

    image_chw: (Cin, H, W) float32 in [0, 255], channels-first (as the torch
               pipeline's permute produces) -> no extra HBM transpose copy here.
    Returns (saliency_u8 (H, W), class_idx, class_score).
    """
    Cin, H, W = image_chw.shape
    HW = H * W
    NC, Cf = fc_w.shape

    if tile_hw is None:
        tile_hw = _pick_tile_hw(HW)
    assert HW % tile_hw == 0, "tile_hw must divide H*W"
    num_tiles = HW // tile_hw

    # --- fold preprocess ((x/255 - mean)/std) into the 1x1-conv weights --------
    mean = mean.astype(jnp.float32)
    std = std.astype(jnp.float32)
    conv_w32 = conv_w.astype(jnp.float32)
    conv_w_f = conv_w32 * (1.0 / (255.0 * std))[None, :]           # (Cf, Cin)
    conv_b_f = (-(conv_w32 @ (mean / std))).reshape(Cf, 1)         # (Cf, 1)

    img2d = image_chw.reshape(Cin, HW).astype(jnp.float32)         # contiguous view, no copy
    fcw = fc_w.astype(jnp.float32)                                 # (NC, Cf)
    fcb_col = fc_b.reshape(NC, 1).astype(jnp.float32)

    # --- phase 1: GAP + classifier head (carried accumulator -> "arbitrary") ---
    w_row, cls_out, score_out = pl.pallas_call(
        functools.partial(cam_head_kernel, inv_hw=1.0 / HW),
        out_shape=(jax.ShapeDtypeStruct((1, Cf), jnp.float32),     # w_c = fc_w[cls, :]
                   jax.ShapeDtypeStruct((1, 1), jnp.int32),        # class index
                   jax.ShapeDtypeStruct((1, 1), jnp.float32)),     # class score
        grid=(num_tiles,),
        in_specs=[
            pl.BlockSpec((Cin, tile_hw), lambda t: (0, t)),
            pl.BlockSpec((Cf, Cin), lambda t: (0, 0)),
            pl.BlockSpec((Cf, 1), lambda t: (0, 0)),
            pl.BlockSpec((NC, Cf), lambda t: (0, 0)),
            pl.BlockSpec((NC, 1), lambda t: (0, 0)),
        ],
        out_specs=(
            pl.BlockSpec((1, Cf), lambda t: (0, 0)),
            pl.BlockSpec((1, 1), lambda t: (0, 0)),
            pl.BlockSpec((1, 1), lambda t: (0, 0)),
        ),
        scratch_shapes=[pltpu.VMEM((Cf, 1), jnp.float32)],
        compiler_params=pltpu.CompilerParams(
            dimension_semantics=("arbitrary",)),
    )(img2d, conv_w_f, conv_b_f, fcw, fcb_col)

    # --- phase 2: saliency tiles + carried global min/max ----------------------
    w_col = w_row.reshape(Cf, 1)
    sal, smin, smax = pl.pallas_call(
        cam_saliency_kernel,
        out_shape=(jax.ShapeDtypeStruct((1, HW), jnp.float32),
                   jax.ShapeDtypeStruct((1, 1), jnp.float32),
                   jax.ShapeDtypeStruct((1, 1), jnp.float32)),
        grid=(num_tiles,),
        in_specs=[
            pl.BlockSpec((Cin, tile_hw), lambda t: (0, t)),
            pl.BlockSpec((Cf, Cin), lambda t: (0, 0)),
            pl.BlockSpec((Cf, 1), lambda t: (0, 0)),
            pl.BlockSpec((Cf, 1), lambda t: (0, 0)),
        ],
        out_specs=(
            pl.BlockSpec((1, tile_hw), lambda t: (0, t)),
            pl.BlockSpec((1, 1), lambda t: (0, 0)),
            pl.BlockSpec((1, 1), lambda t: (0, 0)),
        ),
        scratch_shapes=[pltpu.VMEM((1, 1), jnp.float32),
                        pltpu.VMEM((1, 1), jnp.float32)],
        compiler_params=pltpu.CompilerParams(
            dimension_semantics=("arbitrary",)),
    )(img2d, conv_w_f, conv_b_f, w_col)

    # --- single fused epilogue: (sal - min) * scale -> uint8 (torch .to(uint8)) -
    scale = jnp.where(smax > smin, 255.0 / (smax - smin), 0.0)      # guard constant map
    saliency_u8 = ((sal - smin) * scale).astype(jnp.uint8).reshape(H, W)

    class_idx = cls_out[0, 0]
    class_score = score_out[0, 0]
    # TODO(synk): cv2.resize, cv2.applyColorMap (JET) and the 0.5 blend with the
    #             source image are host-side visualization with no Pallas equivalent.
    return saliency_u8, class_idx, class_score


if __name__ == "__main__":
    key = jax.random.PRNGKey(0)
    k_img, k_conv, k_fcw, k_fcb = jax.random.split(key, 4)

    Cin, H, W = 3, 32, 32          # small image, channels-first (torch layout)
    Cf, NC = 32, 16                # feature channels at target layer, num classes

    image_chw = jax.random.uniform(k_img, (Cin, H, W), jnp.float32) * 255.0
    mean = jnp.array([0.485, 0.456, 0.406], jnp.float32)
    std = jnp.array([0.229, 0.224, 0.225], jnp.float32)

    # deterministic synthetic model parameters
    conv_w = jax.random.normal(k_conv, (Cf, Cin), jnp.float32) * 0.3   # 1x1 conv (target layer)
    fc_w = jax.random.normal(k_fcw, (NC, Cf), jnp.float32) * 0.1       # classifier ("softmax") weight
    fc_b = jax.random.normal(k_fcb, (NC,), jnp.float32) * 0.01

    saliency, cls_idx, cls_score = class_activation_map(
        image_chw, mean, std, conv_w, fc_w, fc_b, tile_hw=256)         # 4 HW tiles
    jax.block_until_ready((saliency, cls_idx, cls_score))

    assert saliency.shape == (H, W) and saliency.dtype == jnp.uint8

    # --- pure-JAX reference (un-tiled, un-folded) sanity check ------------------
    x = (image_chw / 255.0 - mean[:, None, None]) / std[:, None, None]
    feat = jnp.maximum(jnp.einsum("fc,chw->fhw", conv_w, x), 0.0)
    logits = feat.mean(axis=(1, 2)) @ fc_w.T + fc_b
    probs = jax.nn.softmax(logits)
    ref_idx = int(jnp.argmax(probs))
    ref_score = float(probs[ref_idx])
    sal_ref = jnp.maximum(fc_w[ref_idx] @ feat.reshape(Cf, -1), 0.0)
    sal_ref_u8 = ((sal_ref - sal_ref.min()) / (sal_ref.max() - sal_ref.min())
                  * 255.0).astype(jnp.uint8).reshape(H, W)

    assert int(cls_idx) == ref_idx
    assert abs(float(cls_score) - ref_score) < 1e-3
    max_diff = int(jnp.max(jnp.abs(saliency.astype(jnp.int32)
                                   - sal_ref_u8.astype(jnp.int32))))
    assert max_diff <= 1, f"saliency mismatch: {max_diff}"

    print("KERNEL_OK")
</pallas_src>

<mosaic_0001>
module attributes {stable_mosaic.version = 11 : i64} {
  func.func @cam_head_kernel(%arg0: i32, %arg1: memref<3x256xf32, #tpu.memory_space<vmem>>, %arg2: memref<32x3xf32, #tpu.memory_space<vmem>>, %arg3: memref<32x1xf32, #tpu.memory_space<vmem>>, %arg4: memref<16x32xf32, #tpu.memory_space<vmem>>, %arg5: memref<16x1xf32, #tpu.memory_space<vmem>>, %arg6: memref<1x32xf32, #tpu.memory_space<vmem>>, %arg7: memref<1x1xi32, #tpu.memory_space<vmem>>, %arg8: memref<1x1xf32, #tpu.memory_space<vmem>>, %arg9: memref<32x1xf32, #tpu.memory_space<vmem>>) attributes {dimension_semantics = [#tpu.dimension_semantics<arbitrary>], iteration_bounds = array<i64: 4>, scalar_prefetch = 0 : i64, scratch_operands = 1 : i64, tpu.core_type = #tpu.core_type<tc>, window_params = [{transform_indices = @transform_0, window_bounds = array<i64: 3, 256>}, {pipeline_mode = #tpu.pipeline_mode<synchronous>, transform_indices = @transform_1, window_bounds = array<i64: 32, 3>}, {pipeline_mode = #tpu.pipeline_mode<synchronous>, transform_indices = @transform_2, window_bounds = array<i64: 32, 1>}, {pipeline_mode = #tpu.pipeline_mode<synchronous>, transform_indices = @transform_3, window_bounds = array<i64: 16, 32>}, {pipeline_mode = #tpu.pipeline_mode<synchronous>, transform_indices = @transform_4, window_bounds = array<i64: 16, 1>}, {pipeline_mode = #tpu.pipeline_mode<synchronous>, transform_indices = @transform_5, window_bounds = array<i64: 1, 32>}, {pipeline_mode = #tpu.pipeline_mode<synchronous>, transform_indices = @transform_6, window_bounds = array<i64: 1, 1>}, {pipeline_mode = #tpu.pipeline_mode<synchronous>, transform_indices = @transform_7, window_bounds = array<i64: 1, 1>}]} {
    %c0_i32 = arith.constant 0 : i32
    %0 = arith.cmpi eq, %arg0, %c0_i32 : i32
    %1 = arith.extui %0 : i1 to i32
    %c0_i32_0 = arith.constant 0 : i32
    %2 = arith.cmpi ne, %1, %c0_i32_0 : i32
    scf.if %2 {
      %cst_13 = arith.constant 0.000000e+00 : f32
      %19 = vector.broadcast %cst_13 : f32 to vector<32x1xf32>
      %c0_14 = arith.constant 0 : index
      %c0_15 = arith.constant 0 : index
      %20 = vector.load %arg9[%c0_14, %c0_15] : memref<32x1xf32, #tpu.memory_space<vmem>>, vector<32x1xf32>
      tpu.vector_store %arg9[%c0_14, %c0_15], %19 {strides = array<i32>} : memref<32x1xf32, #tpu.memory_space<vmem>>, vector<32x1xf32>,
    } else {
    }
    %c0 = arith.constant 0 : index
    %c0_1 = arith.constant 0 : index
    %3 = vector.load %arg2[%c0, %c0_1] : memref<32x3xf32, #tpu.memory_space<vmem>>, vector<32x3xf32>
    %c0_2 = arith.constant 0 : index
    %c0_3 = arith.constant 0 : index
    %4 = vector.load %arg1[%c0_2, %c0_3] : memref<3x256xf32, #tpu.memory_space<vmem>>, vector<3x256xf32>
    %cst = arith.constant dense<0.000000e+00> : vector<32x256xf32>
    %5 = tpu.matmul %3, %4, %cst {dimension_numbers = #tpu.dot_dimension_numbers<[1], [0], [0], [1], [0, 0, 1, 1], [], []>} : vector<32x3xf32>, vector<3x256xf32>, vector<32x256xf32> -> vector<32x256xf32>
    %c0_4 = arith.constant 0 : index
    %c0_5 = arith.constant 0 : index
    %6 = vector.load %arg3[%c0_4, %c0_5] : memref<32x1xf32, #tpu.memory_space<vmem>>, vector<32x1xf32>
    %7 = vector.broadcast %6 : vector<32x1xf32> to vector<32x256xf32>
    %8 = arith.addf %5, %7 : vector<32x256xf32>
    %cst_6 = arith.constant 0.000000e+00 : f32
    %9 = vector.broadcast %cst_6 : f32 to vector<32x256xf32>
    %10 = arith.maximumf %8, %9 : vector<32x256xf32>
    %c0_7 = arith.constant 0 : index
    %c0_8 = arith.constant 0 : index
    %11 = vector.load %arg9[%c0_7, %c0_8] : memref<32x1xf32, #tpu.memory_space<vmem>>, vector<32x1xf32>
    %cst_9 = arith.constant dense<0.000000e+00> : vector<32xf32>
    %12 = vector.multi_reduction <add>, %10, %cst_9 [1] : vector<32x256xf32> to vector<32xf32>
    %13 = vector.shape_cast %12 : vector<32xf32> to vector<32x1xf32>
    %14 = arith.addf %11, %13 : vector<32x1xf32>
    %c0_10 = arith.constant 0 : index
    %c0_11 = arith.constant 0 : index
    %15 = vector.load %arg9[%c0_10, %c0_11] : memref<32x1xf32, #tpu.memory_space<vmem>>, vector<32x1xf32>
    tpu.vector_store %arg9[%c0_10, %c0_11], %14 {strides = array<i32>} : memref<32x1xf32, #tpu.memory_space<vmem>>, vector<32x1xf32>,
    %c3_i32 = arith.constant 3 : i32
    %16 = arith.cmpi eq, %arg0, %c3_i32 : i32
    %17 = arith.extui %16 : i1 to i32
    %c0_i32_12 = arith.constant 0 : i32
    %18 = arith.cmpi ne, %17, %c0_i32_12 : i32
    scf.if %18 {
      %c0_13 = arith.constant 0 : index
      %c0_14 = arith.constant 0 : index
      %19 = vector.load %arg9[%c0_13, %c0_14] : memref<32x1xf32, #tpu.memory_space<vmem>>, vector<32x1xf32>
      %cst_15 = arith.constant 9.765625E-4 : f32
      %20 = vector.broadcast %cst_15 : f32 to vector<32x1xf32>
      %21 = arith.mulf %19, %20 : vector<32x1xf32>
      %c0_16 = arith.constant 0 : index
      %c0_17 = arith.constant 0 : index
      %22 = vector.load %arg4[%c0_16, %c0_17] : memref<16x32xf32, #tpu.memory_space<vmem>>, vector<16x32xf32>
      %cst_18 = arith.constant dense<0.000000e+00> : vector<16x1xf32>
      %23 = tpu.matmul %22, %21, %cst_18 {dimension_numbers = #tpu.dot_dimension_numbers<[1], [0], [0], [1], [0, 0, 1, 1], [], []>} : vector<16x32xf32>, vector<32x1xf32>, vector<16x1xf32> -> vector<16x1xf32>
      %c0_19 = arith.constant 0 : index
      %c0_20 = arith.constant 0 : index
      %24 = vector.load %arg5[%c0_19, %c0_20] : memref<16x1xf32, #tpu.memory_space<vmem>>, vector<16x1xf32>
      %25 = arith.addf %23, %24 : vector<16x1xf32>
      %cst_21 = arith.constant dense<0xFF800000> : vector<1xf32>
      %26 = vector.multi_reduction <maximumf>, %25, %cst_21 [0] : vector<16x1xf32> to vector<1xf32>
      %27 = vector.shape_cast %26 : vector<1xf32> to vector<1x1xf32>
      %28 = vector.broadcast %27 : vector<1x1xf32> to vector<16x1xf32>
      %29 = arith.subf %25, %28 : vector<16x1xf32>
      %30 = math.exp %29 : vector<16x1xf32>
      %cst_22 = arith.constant dense<0.000000e+00> : vector<1xf32>
      %31 = vector.multi_reduction <add>, %30, %cst_22 [0] : vector<16x1xf32> to vector<1xf32>
      %32 = vector.shape_cast %31 : vector<1xf32> to vector<1x1xf32>
      %cst_23 = arith.constant 1.000000e+00 : f32
      %33 = vector.broadcast %cst_23 : f32 to vector<1x1xf32>
      %34 = arith.divf %33, %32 : vector<1x1xf32>
      %c0_24 = arith.constant 0 : index
      %c0_25 = arith.constant 0 : index
      %35 = vector.load %arg8[%c0_24, %c0_25] : memref<1x1xf32, #tpu.memory_space<vmem>>, vector<1x1xf32>
      tpu.vector_store %arg8[%c0_24, %c0_25], %34 {strides = array<i32>} : memref<1x1xf32, #tpu.memory_space<vmem>>, vector<1x1xf32>,
      %36 = tpu.iota {dimensions = array<i32: 0>} : vector<16x1xi32>
      %37 = vector.broadcast %27 : vector<1x1xf32> to vector<16x1xf32>
      %38 = arith.cmpf oeq, %25, %37 : vector<16x1xf32>
      %c16_i32 = arith.constant 16 : i32
      %39 = vector.broadcast %c16_i32 : i32 to vector<16x1xi32>
      %40 = arith.select %38, %36, %39 : vector<16x1xi1>, vector<16x1xi32>
      %cst_26 = arith.constant dense<2147483647> : vector<1xi32>
      %41 = vector.multi_reduction <minsi>, %40, %cst_26 [0] : vector<16x1xi32> to vector<1xi32>
      %42 = vector.shape_cast %41 : vector<1xi32> to vector<1x1xi32>
      %c15_i32 = arith.constant 15 : i32
      %43 = vector.broadcast %c15_i32 : i32 to vector<1x1xi32>
      %44 = arith.minsi %42, %43 : vector<1x1xi32>
      %c0_27 = arith.constant 0 : index
      %c0_28 = arith.constant 0 : index
      %45 = vector.load %arg7[%c0_27, %c0_28] : memref<1x1xi32, #tpu.memory_space<vmem>>, vector<1x1xi32>
      tpu.vector_store %arg7[%c0_27, %c0_28], %44 {strides = array<i32>} : memref<1x1xi32, #tpu.memory_space<vmem>>, vector<1x1xi32>,
      %46 = vector.shape_cast %40 : vector<16x1xi32> to vector<1x16x1xi32>
      %cst_29 = arith.constant dense<2147483647> : vector<1xi32>
      %47 = vector.multi_reduction <minsi>, %46, %cst_29 [1, 2] : vector<1x16x1xi32> to vector<1xi32>
      %48 = vector.shape_cast %47 : vector<1xi32> to vector<1x1x1xi32>
      %49 = vector.extract %48[0, 0, 0] : i32 from vector<1x1x1xi32>
      %c15_i32_30 = arith.constant 15 : i32
      %50 = arith.minsi %49, %c15_i32_30 : i32
      %51 = arith.index_cast %50 : i32 to index
      %c0_31 = arith.constant 0 : index
      %52 = vector.load %arg4[%51, %c0_31] : memref<16x32xf32, #tpu.memory_space<vmem>>, vector<1x32xf32>
      %c0_32 = arith.constant 0 : index
      %c0_33 = arith.constant 0 : index
      %53 = vector.load %arg6[%c0_32, %c0_33] : memref<1x32xf32, #tpu.memory_space<vmem>>, vector<1x32xf32>
      tpu.vector_store %arg6[%c0_32, %c0_33], %52 {strides = array<i32>} : memref<1x32xf32, #tpu.memory_space<vmem>>, vector<1x32xf32>,
    } else {
    }
    return
  }
  func.func @transform_0(%arg0: i32) -> (i32, i32) {
    %c0_i32 = arith.constant 0 : i32
    %c0_i32_0 = arith.constant 0 : i32
    return %c0_i32, %arg0 : i32, i32
  }
  func.func @transform_1(%arg0: i32) -> (i32, i32) {
    %c0_i32 = arith.constant 0 : i32
    %c0_i32_0 = arith.constant 0 : i32
    %c0_i32_1 = arith.constant 0 : i32
    return %c0_i32, %c0_i32_0 : i32, i32
  }
  func.func @transform_2(%arg0: i32) -> (i32, i32) {
    %c0_i32 = arith.constant 0 : i32
    %c0_i32_0 = arith.constant 0 : i32
    %c0_i32_1 = arith.constant 0 : i32
    return %c0_i32, %c0_i32_0 : i32, i32
  }
  func.func @transform_3(%arg0: i32) -> (i32, i32) {
    %c0_i32 = arith.constant 0 : i32
    %c0_i32_0 = arith.constant 0 : i32
    %c0_i32_1 = arith.constant 0 : i32
    return %c0_i32, %c0_i32_0 : i32, i32
  }
  func.func @transform_4(%arg0: i32) -> (i32, i32) {
    %c0_i32 = arith.constant 0 : i32
    %c0_i32_0 = arith.constant 0 : i32
    %c0_i32_1 = arith.constant 0 : i32
    return %c0_i32, %c0_i32_0 : i32, i32
  }
  func.func @transform_5(%arg0: i32) -> (i32, i32) {
    %c0_i32 = arith.constant 0 : i32
    %c0_i32_0 = arith.constant 0 : i32
    %c0_i32_1 = arith.constant 0 : i32
    return %c0_i32, %c0_i32_0 : i32, i32
  }
  func.func @transform_6(%arg0: i32) -> (i32, i32) {
    %c0_i32 = arith.constant 0 : i32
    %c0_i32_0 = arith.constant 0 : i32
    %c0_i32_1 = arith.constant 0 : i32
    return %c0_i32, %c0_i32_0 : i32, i32
  }
  func.func @transform_7(%arg0: i32) -> (i32, i32) {
    %c0_i32 = arith.constant 0 : i32
    %c0_i32_0 = arith.constant 0 : i32
    %c0_i32_1 = arith.constant 0 : i32
    return %c0_i32, %c0_i32_0 : i32, i32
  }
}

</mosaic_0001>

<llo_original>
// kernel: tpu_custom_call.1
$region0: #{tpu_custom_call.1}
  #allocation0 [shape = 'u32[]', space=smem, size = 0x4, offset = 0x4, fixed_abs, tag = 'smem constant byte address 0x4 - core index']
  #allocation1 [shape = 'u32[72,128]{1,0:T(1,128)}', space=vmem, size = 0x9000, scoped, tag = 'internal scratch']
  #allocation2 [shape = 'f32[32,1]{1,0:T(8,128)}', space=vmem, size = 0x4000, scoped, tag = 'scratch operand']
  %s0 = inlined_call_operand.vmem [shape: f32[3,1024], index: 0, kind: input, shape index: {}]
  %s1 = inlined_call_operand.vmem [shape: f32[32,3], index: 1, kind: input, shape index: {}]
  %s2 = inlined_call_operand.vmem [shape: f32[32,1], index: 2, kind: input, shape index: {}]
  %s3 = inlined_call_operand.vmem [shape: f32[16,32], index: 3, kind: input, shape index: {}]
  %s4 = inlined_call_operand.vmem [shape: f32[16,1], index: 4, kind: input, shape index: {}]
  %s5 = inlined_call_operand.hbm [shape: f32[1,32], index: 5, kind: output, shape index: {0}]
  %s6 = inlined_call_operand.hbm [shape: s32[1,1], index: 6, kind: output, shape index: {1}]
  %s7 = inlined_call_operand.hbm [shape: f32[1,1], index: 7, kind: output, shape index: {2}]
  %8 = xla_tuple %s5, %s6, %s7
  %s9 = sld [smem:[#allocation0]]
  $region77: #{tpu_custom_call.1} parent=0
    _
  %s11 = ssub.s32 1, %s9
  %s12 = scalar_select 0, %s11, %s9
  $region1: #{tpu_custom_call.1} parent=0
    #allocation3 [shape = 'u8[512]{0}', space=vmem, size = 0x400, scoped, tag = 'output window, operand 0, single buffered']
    #allocation4 [shape = 's32[2]{0}', space=sflag, size = 0x8, scoped, tag = 'scoped memory for tpu_custom_call.1']
    #allocation5 [shape = 'u8[512]{0}', space=vmem, size = 0x400, scoped, tag = 'output window, operand 1, single buffered']
    #allocation6 [shape = 's32[1]{0}', space=sflag, size = 0x4, scoped, tag = 'scoped memory for tpu_custom_call.1']
    #allocation7 [shape = 'u8[512]{0}', space=vmem, size = 0x400, scoped, tag = 'output window, operand 2, single buffered']
    %13 = vsyncpa [#allocation4], 0
    %14 = vsyncpa [#allocation6], 0
    loop: start=0, step=1, limit=6
    $region2: #{tpu_custom_call.1} parent=1 // loop_pre_header
      _
    $region3: #{tpu_custom_call.1} parent=1 // loop_header
      %s16 = sphi 0, %s20
      %p17 = scmp.ge.s32.totalorder %s16, 6
      %s26 = sphi 0, %s28
      %s29 = sphi 0, %s26
      %s30 = sphi 0, %s29
      %s46 = sphi 0, %s30
      %s50 = sphi 0, %s50
      %s52 = sphi 0, %s50
      %s53 = sphi 0, %s52
      %s67 = sphi 0, %s53
      %s71 = sphi 0, %s71
      %s73 = sphi 0, %s71
      %s74 = sphi 0, %s73
      %s88 = sphi 0, %s74
      %s92 = sphi 0, %s92
      %s94 = sphi 0, %s92
      %s95 = sphi 0, %s94
      %s109 = sphi 0, %s95
      %s113 = sphi 0, %s113
      %s115 = sphi 0, %s113
      %s116 = sphi 0, %s115
      %s130 = sphi 0, %s116
      %s134 = sphi 0, %s134
      %s136 = sphi 0, %s134
      %s137 = sphi 0, %s136
      %s151 = sphi 0, %s137
      %s155 = sphi 0, %s155
      %s157 = sphi 0, %s155
      %s158 = sphi 0, %s157
      %s172 = sphi 0, %s158
      %s176 = sphi 0, %s176
      %s178 = sphi 0, %s176
      %s179 = sphi 0, %s178
      %s193 = sphi 0, %s179
    $region4: #{tpu_custom_call.1} parent=1 // loop_header_branch
      %19 = sbr.rel (%p17) target = $region8
    $region5: #{tpu_custom_call.1} parent=1 // loop_body
      %s21 = ssub.s32 %s16, 1
      %s22 = ssub.s32 %s16, 2
      %s23 = sadd.s32 %s16, 1
      %s24 = ssub.s32 %s16, %s23
      %p25 = scmp.eq.s32.totalorder %s24, 0
      %s27 = sadd.s32 %s26, 1
      %s28 = scalar_select %p25, %s26, %s27
      %p31 = pneg %p25
      %p32 = scmp.eq.s32.totalorder %s16, 3
      %p33 = por %p31, %p32
      %p34 = scmp.ne.s32.totalorder %s26, %s29
      %p35 = scmp.eq.s32.totalorder %s16, 0
      %p36 = por %p34, %p35
      %p37 = scmp.ne.s32.totalorder %s26, %s29
      %p38 = scmp.eq.s32.totalorder %s21, 3
      %p39 = por %p37, %p38
      %p40 = scmp.ne.s32.totalorder %s29, %s30
      %p41 = scmp.eq.s32.totalorder %s21, 0
      %p42 = por %p40, %p41
      %p43 = scmp.ne.s32.totalorder %s29, %s30
      %p44 = scmp.eq.s32.totalorder %s22, 3
      %p45 = por %p43, %p44
      %p47 = scmp.ne.s32.totalorder %s30, %s46
      %p48 = scmp.eq.s32.totalorder %s22, 0
      %p49 = por %p47, %p48
      %s51 = sadd.s32 %s50, 1
      %p54 = scmp.eq.s32.totalorder %s16, 3
      %p55 = scmp.ne.s32.totalorder %s50, %s52
      %p56 = scmp.eq.s32.totalorder %s16, 0
      %p57 = por %p55, %p56
      %p58 = scmp.ne.s32.totalorder %s50, %s52
      %p59 = scmp.eq.s32.totalorder %s21, 3
      %p60 = por %p58, %p59
      %p61 = scmp.ne.s32.totalorder %s52, %s53
      %p62 = scmp.eq.s32.totalorder %s21, 0
      %p63 = por %p61, %p62
      %p64 = scmp.ne.s32.totalorder %s52, %s53
      %p65 = scmp.eq.s32.totalorder %s22, 3
      %p66 = por %p64, %p65
      %p68 = scmp.ne.s32.totalorder %s53, %s67
      %p69 = scmp.eq.s32.totalorder %s22, 0
      %p70 = por %p68, %p69
      %s72 = sadd.s32 %s71, 1
      %p75 = scmp.eq.s32.totalorder %s16, 3
      %p76 = scmp.ne.s32.totalorder %s71, %s73
      %p77 = scmp.eq.s32.totalorder %s16, 0
      %p78 = por %p76, %p77
      %p79 = scmp.ne.s32.totalorder %s71, %s73
      %p80 = scmp.eq.s32.totalorder %s21, 3
      %p81 = por %p79, %p80
      %p82 = scmp.ne.s32.totalorder %s73, %s74
      %p83 = scmp.eq.s32.totalorder %s21, 0
      %p84 = por %p82, %p83
      %p85 = scmp.ne.s32.totalorder %s73, %s74
      %p86 = scmp.eq.s32.totalorder %s22, 3
      %p87 = por %p85, %p86
      %p89 = scmp.ne.s32.totalorder %s74, %s88
      %p90 = scmp.eq.s32.totalorder %s22, 0
      %p91 = por %p89, %p90
      %s93 = sadd.s32 %s92, 1
      %p96 = scmp.eq.s32.totalorder %s16, 3
      %p97 = scmp.ne.s32.totalorder %s92, %s94
      %p98 = scmp.eq.s32.totalorder %s16, 0
      %p99 = por %p97, %p98
      %p100 = scmp.ne.s32.totalorder %s92, %s94
      %p101 = scmp.eq.s32.totalorder %s21, 3
      %p102 = por %p100, %p101
      %p103 = scmp.ne.s32.totalorder %s94, %s95
      %p104 = scmp.eq.s32.totalorder %s21, 0
      %p105 = por %p103, %p104
      %p106 = scmp.ne.s32.totalorder %s94, %s95
      %p107 = scmp.eq.s32.totalorder %s22, 3
      %p108 = por %p106, %p107
      %p110 = scmp.ne.s32.totalorder %s95, %s109
      %p111 = scmp.eq.s32.totalorder %s22, 0
      %p112 = por %p110, %p111
      %s114 = sadd.s32 %s113, 1
      %p117 = scmp.eq.s32.totalorder %s16, 3
      %p118 = scmp.ne.s32.totalorder %s113, %s115
      %p119 = scmp.eq.s32.totalorder %s16, 0
      %p120 = por %p118, %p119
      %p121 = scmp.ne.s32.totalorder %s113, %s115
      %p122 = scmp.eq.s32.totalorder %s21, 3
      %p123 = por %p121, %p122
      %p124 = scmp.ne.s32.totalorder %s115, %s116
      %p125 = scmp.eq.s32.totalorder %s21, 0
      %p126 = por %p124, %p125
      %p127 = scmp.ne.s32.totalorder %s115, %s116
      %p128 = scmp.eq.s32.totalorder %s22, 3
      %p129 = por %p127, %p128
      %p131 = scmp.ne.s32.totalorder %s116, %s130
      %p132 = scmp.eq.s32.totalorder %s22, 0
      %p133 = por %p131, %p132
      %s135 = sadd.s32 %s134, 1
      %p138 = scmp.eq.s32.totalorder %s16, 3
      %p139 = scmp.ne.s32.totalorder %s134, %s136
      %p140 = scmp.eq.s32.totalorder %s16, 0
      %p141 = por %p139, %p140
      %p142 = scmp.ne.s32.totalorder %s134, %s136
      %p143 = scmp.eq.s32.totalorder %s21, 3
      %p144 = por %p142, %p143
      %p145 = scmp.ne.s32.totalorder %s136, %s137
      %p146 = scmp.eq.s32.totalorder %s21, 0
      %p147 = por %p145, %p146
      %p148 = scmp.ne.s32.totalorder %s136, %s137
      %p149 = scmp.eq.s32.totalorder %s22, 3
      %p150 = por %p148, %p149
      %p152 = scmp.ne.s32.totalorder %s137, %s151
      %p153 = scmp.eq.s32.totalorder %s22, 0
      %p154 = por %p152, %p153
      %s156 = sadd.s32 %s155, 1
      %p159 = scmp.eq.s32.totalorder %s16, 3
      %p160 = scmp.ne.s32.totalorder %s155, %s157
      %p161 = scmp.eq.s32.totalorder %s16, 0
      %p162 = por %p160, %p161
      %p163 = scmp.ne.s32.totalorder %s155, %s157
      %p164 = scmp.eq.s32.totalorder %s21, 3
      %p165 = por %p163, %p164
      %p166 = scmp.ne.s32.totalorder %s157, %s158
      %p167 = scmp.eq.s32.totalorder %s21, 0
      %p168 = por %p166, %p167
      %p169 = scmp.ne.s32.totalorder %s157, %s158
      %p170 = scmp.eq.s32.totalorder %s22, 3
      %p171 = por %p169, %p170
      %p173 = scmp.ne.s32.totalorder %s158, %s172
      %p174 = scmp.eq.s32.totalorder %s22, 0
      %p175 = por %p173, %p174
      %s177 = sadd.s32 %s176, 1
      %p180 = scmp.eq.s32.totalorder %s16, 3
      %p181 = scmp.ne.s32.totalorder %s176, %s178
      %p182 = scmp.eq.s32.totalorder %s16, 0
      %p183 = por %p181, %p182
      %p184 = scmp.ne.s32.totalorder %s176, %s178
      %p185 = scmp.eq.s32.totalorder %s21, 3
      %p186 = por %p184, %p185
      %p187 = scmp.ne.s32.totalorder %s178, %s179
      %p188 = scmp.eq.s32.totalorder %s21, 0
      %p189 = por %p187, %p188
      %p190 = scmp.ne.s32.totalorder %s178, %s179
      %p191 = scmp.eq.s32.totalorder %s22, 3
      %p192 = por %p190, %p191
      %p194 = scmp.ne.s32.totalorder %s179, %s193
      %p195 = scmp.eq.s32.totalorder %s22, 0
      %p196 = por %p194, %p195
      %p197 = scmp.le.s32.totalorder 1, %s16
      %p198 = scmp.lt.s32.totalorder %s16, 5
      %p199 = pnand %p197, %p198
      %p200 = pneg %p199
      // Predicated region
      $region9: #{tpu_custom_call.1} parent=5 // pred_check
        _
      $region10: #{tpu_custom_call.1} parent=5 // pred_check_branch
        %202 = sbr.rel (%p199) target = $region12
      $region11: #{tpu_custom_call.1} parent=5 // pred_region
        %s203 = ssub.s32 %s16, 1
        // Predicated region
        $region13: #{tpu_custom_call.1} parent=11 // pred_check
          %p204 = pneg %p63
        $region14: #{tpu_custom_call.1} parent=11 // pred_check_branch
          %206 = sbr.rel (%p204) target = $region16
        $region15: #{tpu_custom_call.1} parent=11 // pred_region
          _
        $region16: #{tpu_custom_call.1} parent=11 // pred_fallthru
          _
        // Predicated region
        $region17: #{tpu_custom_call.1} parent=11 // pred_check
          %p207 = pneg %p84
        $region18: #{tpu_custom_call.1} parent=11 // pred_check_branch
          %209 = sbr.rel (%p207) target = $region20
        $region19: #{tpu_custom_call.1} parent=11 // pred_region
          _
        $region20: #{tpu_custom_call.1} parent=11 // pred_fallthru
          _
        // Predicated region
        $region21: #{tpu_custom_call.1} parent=11 // pred_check
          %p210 = pneg %p105
        $region22: #{tpu_custom_call.1} parent=11 // pred_check_branch
          %212 = sbr.rel (%p210) target = $region24
        $region23: #{tpu_custom_call.1} parent=11 // pred_region
          _
        $region24: #{tpu_custom_call.1} parent=11 // pred_fallthru
          _
        // Predicated region
        $region25: #{tpu_custom_call.1} parent=11 // pred_check
          %p213 = pneg %p126
        $region26: #{tpu_custom_call.1} parent=11 // pred_check_branch
          %215 = sbr.rel (%p213) target = $region28
        $region27: #{tpu_custom_call.1} parent=11 // pred_region
          _
        $region28: #{tpu_custom_call.1} parent=11 // pred_fallthru
          _
      $region12: #{tpu_custom_call.1} parent=5 // pred_fallthru
        _
      %p216 = scmp.lt.s32.totalorder %s16, 4
      // Predicated region
      $region29: #{tpu_custom_call.1} parent=5 // pred_check
        %p217 = pneg %p216
      $region30: #{tpu_custom_call.1} parent=5 // pred_check_branch
        %219 = sbr.rel (%p217) target = $region32
      $region31: #{tpu_custom_call.1} parent=5 // pred_region
        // Predicated region
        $region33: #{tpu_custom_call.1} parent=31 // pred_check
          %p220 = pneg %p36
        $region34: #{tpu_custom_call.1} parent=31 // pred_check_branch
          %222 = sbr.rel (%p220) target = $region36
        $region35: #{tpu_custom_call.1} parent=31 // pred_region
          %s223 = smul.u32 2, %s16
          %p224 = scmp.lt.s32.totalorder %s223, 7
          %s225 = scalar_select %p224, %s223, 7
          %s226 = smul.addr %s225, 4
          %s227 = scalar_lea.vmem %s0, %s226
          %s228 = smul.u32 2, %s16
        $region36: #{tpu_custom_call.1} parent=31 // pred_fallthru
          _
      $region32: #{tpu_custom_call.1} parent=5 // pred_fallthru
        _
      %p229 = scmp.le.s32.totalorder 1, %s16
      %p230 = scmp.lt.s32.totalorder %s16, 5
      %p231 = pnand %p229, %p230
      %p232 = pneg %p231
      // Predicated region
      $region37: #{tpu_custom_call.1} parent=5 // pred_check
        _
      $region38: #{tpu_custom_call.1} parent=5 // pred_check_branch
        %234 = sbr.rel (%p231) target = $region40
      $region39: #{tpu_custom_call.1} parent=5 // pred_region
        %s235 = ssub.s32 %s16, 1
        %s236 = smul.u32 2, %s21
        %p237 = scmp.lt.s32.totalorder %s236, 7
        %s238 = scalar_select %p237, %s236, 7
        %s239 = smul.addr %s238, 4
        %s240 = scalar_lea.vmem %s0, %s239
        %p241 = pneg %p42
        %p242 = pneg %p39
        %p243 = pneg %p63
        %p244 = pneg %p60
        %p245 = pneg %p84
        %p246 = pneg %p81
        %p247 = pneg %p105
        %p248 = pneg %p102
        %p249 = pneg %p126
        %p250 = pneg %p123
        %p251 = pneg %p147
        %p252 = pneg %p144
        %p253 = pneg %p168
        %p254 = pneg %p165
        %p255 = pneg %p189
        %p256 = pneg %p186
        %s257 = smul.u32 2, %s21
        %p258 = scmp.lt.s32.totalorder %s257, 7
        %s259 = scalar_select %p258, %s257, 7
        %s260 = smul.addr %s259, 4
        %s261 = scalar_lea.vmem %s0, %s260
        %s262 = smul.u32 2, %s21
        %p263 = scmp.eq.s32.totalorder %s21, 0
        // Predicated region
        $region41: #{tpu_custom_call.1} parent=39 // pred_check
          %p264 = pneg %p263
        $region42: #{tpu_custom_call.1} parent=39 // pred_check_branch
          %266 = sbr.rel (%p264) target = $region44
        $region43: #{tpu_custom_call.1} parent=39 // pred_region
          %vm267 = vcmask 7168
          %268 = vst.msk [vmem:[#allocation2] sm:$0xff] %vm267, 0.0
          %269 = vst.msk [vmem:[#allocation2 + $0x8] sm:$0xff] %vm267, 0.0
          %270 = vst.msk [vmem:[#allocation2 + $0x10] sm:$0xff] %vm267, 0.0
          %271 = vst.msk [vmem:[#allocation2 + $0x18] sm:$0xff] %vm267, 0.0
        $region44: #{tpu_custom_call.1} parent=39 // pred_fallthru
          _
        %v272 = vld [vmem:[%s1] sm:$0xff]
        %v273 = vld [vmem:[%s1 + $0x8] sm:$0xff]
        %v274 = vld [vmem:[%s1 + $0x10] sm:$0xff]
        %v275 = vld [vmem:[%s1 + $0x18] sm:$0xff]
        %v276 = vld [vmem:[%s261] sm:$0x77]
        %v277 = vld [vmem:[%s2] sm:$0xff]
        %v278 = vld [vmem:[%s2 + $0x8] sm:$0xff]
        %v279 = vld [vmem:[%s2 + $0x10] sm:$0xff]
        %v280 = vld [vmem:[%s2 + $0x18] sm:$0xff]
        %282 = vset.pattern.permute.xlu0 0
        %283 = vperm.xlu0 %282, %v277
        %v284 = vpop.permute.xlu0 %283
        %287 = vset.pattern.permute.xlu0 0
        %288 = vperm.xlu0 %287, %v278
        %v289 = vpop.permute.xlu0 %288
        %292 = vset.pattern.permute.xlu0 0
        %293 = vperm.xlu0 %292, %v279
        %v294 = vpop.permute.xlu0 %293
        %297 = vset.pattern.permute.xlu0 0
        %298 = vperm.xlu0 %297, %v280
        %v299 = vpop.permute.xlu0 %298
        %302 = vst [vmem:[#allocation1] ss:$2 sm:$0xff] %v276
        %v303 = vld.sshfl [vmem:[#allocation1] sm:$0xff pattern:$0x75316420]
        %v304 = vld.sshfl [vmem:[#allocation1 + $0x8] sm:$0xff pattern:$0x75316420]
        %vm305 = vcmask 23552
        %v307 = vsel %vm305, %v272, 0
        %v310 = vsel %vm305, %v273, 0
        %v313 = vsel %vm305, %v274, 0
        %v316 = vsel %vm305, %v275, 0
        %vm318 = vcmask 1042432
        %v319 = vsel %vm318, %v303, 0
        %v321 = vsel %vm318, %v304, 0
        %323 = vmatpush.msra.mxu0 0.0
        %324 = vmatpush.msra.mxu0 0.0
        %325 = vmatpush.msra.mxu0 0.0
        %326 = vmatpush.msra.mxu0 0.0
        %327 = vmatpush.msra.mxu0 0.0
        %328 = vmatpush.msra.mxu0 0.0
        %329 = vmatpush.msra.mxu0 0.0
        %330 = vmatpush.msra.mxu0 0.0
        %331 = vmatpush.msra.mxu0 0.0
        %332 = vmatpush.msra.mxu0 0.0
        %333 = vmatpush.msra.mxu0 0.0
        %334 = vmatpush.msra.mxu0 0.0
        %335 = vmatpush.msra.mxu0 0.0
        %336 = vmatpush.msra.mxu0 0.0
        %337 = vmatpush.msra.mxu0 0.0
        %338 = vmatpush.msra.mxu0 %v319
        %339 = vmatmul.f32.gmra.mxu0 %v307
        %v340 = vpop.f32.mrf.mxu0
        %v341 = vadd.f32 %v284, %v340
        %342 = vmatmul.f32.gmra.mxu0 %v310
        %v343 = vpop.f32.mrf.mxu0
        %v344 = vadd.f32 %v289, %v343
        %345 = vmatmul.f32.gmra.mxu0 %v313
        %v346 = vpop.f32.mrf.mxu0
        %v347 = vadd.f32 %v294, %v346
        %348 = vmatmul.f32.gmra.mxu0 %v316
        %v349 = vpop.f32.mrf.mxu0
        %v350 = vadd.f32 %v299, %v349
        %351 = vdwg.mxu0
        %352 = vmatpush.msra.mxu0 0.0
        %353 = vmatpush.msra.mxu0 0.0
        %354 = vmatpush.msra.mxu0 0.0
        %355 = vmatpush.msra.mxu0 0.0
        %356 = vmatpush.msra.mxu0 0.0
        %357 = vmatpush.msra.mxu0 0.0
        %358 = vmatpush.msra.mxu0 0.0
        %359 = vmatpush.msra.mxu0 0.0
        %360 = vmatpush.msra.mxu0 0.0
        %361 = vmatpush.msra.mxu0 0.0
        %362 = vmatpush.msra.mxu0 0.0
        %363 = vmatpush.msra.mxu0 0.0
        %364 = vmatpush.msra.mxu0 0.0
        %365 = vmatpush.msra.mxu0 0.0
        %366 = vmatpush.msra.mxu0 0.0
        %367 = vmatpush.msra.mxu0 %v321
        %368 = vmatmul.f32.gmra.mxu0 %v307
        %v369 = vpop.f32.mrf.mxu0
        %v370 = vadd.f32 %v284, %v369
        %371 = vmatmul.f32.gmra.mxu0 %v310
        %v372 = vpop.f32.mrf.mxu0
        %v373 = vadd.f32 %v289, %v372
        %374 = vmatmul.f32.gmra.mxu0 %v313
        %v375 = vpop.f32.mrf.mxu0
        %v376 = vadd.f32 %v294, %v375
        %377 = vmatmul.f32.gmra.mxu0 %v316
        %v378 = vpop.f32.mrf.mxu0
        %v379 = vadd.f32 %v299, %v378
        %380 = vdwg.mxu0
        %v381 = vmax.f32 %v341, 0.0
        %v382 = vmax.f32 %v370, 0.0
        %v383 = vmax.f32 %v344, 0.0
        %v384 = vmax.f32 %v373, 0.0
        %v385 = vmax.f32 %v347, 0.0
        %v386 = vmax.f32 %v376, 0.0
        %v387 = vmax.f32 %v350, 0.0
        %v388 = vmax.f32 %v379, 0.0
        %v389 = vld [vmem:[#allocation2] sm:$0xff]
        %v390 = vld [vmem:[#allocation2 + $0x8] sm:$0xff]
        %v391 = vld [vmem:[#allocation2 + $0x10] sm:$0xff]
        %v392 = vld [vmem:[#allocation2 + $0x18] sm:$0xff]
        %v393 = vadd.f32 %v381, %v382
        %394 = vadd.xlane.f32.xlu0 %v393
        %v395 = vpop.xlane.xlu0 %394
        %v396 = vadd.f32 %v383, %v384
        %397 = vadd.xlane.f32.xlu0 %v396
        %v398 = vpop.xlane.xlu0 %397
        %v399 = vadd.f32 %v385, %v386
        %400 = vadd.xlane.f32.xlu0 %v399
        %v401 = vpop.xlane.xlu0 %400
        %v402 = vadd.f32 %v387, %v388
        %403 = vadd.xlane.f32.xlu0 %v402
        %v404 = vpop.xlane.xlu0 %403
        %v405 = vadd.f32 %v389, %v395
        %v406 = vadd.f32 %v390, %v398
        %v407 = vadd.f32 %v391, %v401
        %v408 = vadd.f32 %v392, %v404
        %vm409 = vcmask 7168
        %410 = vst.msk [vmem:[#allocation2] sm:$0xff] %vm409, %v405
        %411 = vst.msk [vmem:[#allocation2 + $0x8] sm:$0xff] %vm409, %v406
        %412 = vst.msk [vmem:[#allocation2 + $0x10] sm:$0xff] %vm409, %v407
        %413 = vst.msk [vmem:[#allocation2 + $0x18] sm:$0xff] %vm409, %v408
        %p414 = scmp.eq.s32.totalorder %s21, 3
        // Predicated region
        $region45: #{tpu_custom_call.1} parent=39 // pred_check
          %p415 = pneg %p414
        $region46: #{tpu_custom_call.1} parent=39 // pred_check_branch
          %417 = sbr.rel (%p415) target = $region48
        $region47: #{tpu_custom_call.1} parent=39 // pred_region
          %v418 = vld [vmem:[#allocation2] sm:$0xff]
          %v419 = vld [vmem:[#allocation2 + $0x8] sm:$0xff]
          %v420 = vld [vmem:[#allocation2 + $0x10] sm:$0xff]
          %v421 = vld [vmem:[#allocation2 + $0x18] sm:$0xff]
          %v422 = vmul.f32 %v418, 0.0009765625
          %v423 = vmul.f32 %v419, 0.0009765625
          %v424 = vmul.f32 %v420, 0.0009765625
          %v425 = vmul.f32 %v421, 0.0009765625
          %v426 = vld [vmem:[%s3] sm:$0xff]
          %v427 = vld [vmem:[%s3 + $0x8] sm:$0xff]
          %v428 = vld [vmem:[%s4] sm:$0xff]
          %v429 = vld [vmem:[%s4 + $0x8] sm:$0xff]
          %vm430 = vcmask 261120
          %v432 = vsel %vm430, %v426, 0
          %v435 = vsel %vm430, %v427, 0
          %437 = vmatpush.msra.mxu0 0.0
          %438 = vmatpush.msra.mxu0 0.0
          %439 = vmatpush.msra.mxu0 0.0
          %440 = vmatpush.msra.mxu0 0.0
          %441 = vmatpush.msra.mxu0 0.0
          %442 = vmatpush.msra.mxu0 0.0
          %443 = vmatpush.msra.mxu0 0.0
          %444 = vmatpush.msra.mxu0 0.0
          %445 = vmatpush.msra.mxu0 0.0
          %446 = vmatpush.msra.mxu0 0.0
          %447 = vmatpush.msra.mxu0 0.0
          %448 = vmatpush.msra.mxu0 0.0
          %449 = vmatpush.msra.mxu0 %v425
          %450 = vmatpush.msra.mxu0 %v424
          %451 = vmatpush.msra.mxu0 %v423
          %452 = vmatpush.msra.mxu0 %v422
          %453 = vmatmul.f32.gmra.mxu0 %v432
          %v454 = vpop.f32.mrf.mxu0
          %v455 = vadd.f32 %v428, %v454
          %456 = vmatmul.f32.gmra.mxu0 %v435
          %v457 = vpop.f32.mrf.mxu0
          %v458 = vadd.f32 %v429, %v457
          %459 = vdwg.mxu0
          %v460 = vsel %vm409, %v455, -inf
          %v461 = vsel %vm409, %v458, -inf
          %v462 = vmax.f32 %v460, %v461
          %v463 = vrot.slane %v462, 4
          %v464 = vmax.f32 %v462, %v463
          %v465 = vrot.slane %v464, 2
          %v466 = vmax.f32 %v464, %v465
          %v467 = vrot.slane %v466, 1
          %v468 = vmax.f32 %v466, %v467
          %v469 = vsub.f32 %v455, %v468
          %v470 = vsub.f32 %v458, %v468
          %v471 = vmul.f32 %v469, 1.442695
          %v472 = vpow.pop %v471
          %v473 = vmul.f32 %v470, 1.442695
          %v474 = vpow.pop %v473
          %v475 = vsel %vm409, %v472, 0.0
          %v476 = vsel %vm409, %v474, 0.0
          %v477 = vadd.f32 %v475, %v476
          %v478 = vrot.slane %v477, 4
          %v479 = vadd.f32 %v477, %v478
          %v480 = vrot.slane %v479, 2
          %v481 = vadd.f32 %v479, %v480
          %v482 = vrot.slane %v481, 1
          %v483 = vadd.f32 %v481, %v482
          %v484 = vrcp.pop %v483
          %v485 = vmul.f32 %v483, %v484
          %v486 = vsub.f32 1.0, %v485
          %v487 = vmul.f32 %v484, %v486
          %v488 = vadd.f32 %v484, %v487
          %vm489 = vweird.f32 %v483
          %vm490 = vweird.f32 %v484
          %vm491 = vmor %vm489, %vm490
          %v492 = vsel %vm491, %v484, %v488
          %v493 = vand.u32 2147483647, %v483
          %vm494 = vcmp.eq.f32.partialorder %v493, 8.507059e+37
          %v495 = vand.u32 %v483, 2147483648
          %v496 = vor.u32 1.1754944e-38, %v495
          %v497 = vsel %vm494, %v496, %v492
          %v498 = vmul.f32 1.0, %v497
          %vm499 = vcmask 0
          %500 = vst.msk [vmem:[#allocation7] sm:$0x1] %vm499, %v498
          %v501 = vlaneseq
          %v502 = vshrl.u32 %v501, 7
          %v503 = vadd.s32 %v502, 8
          %vm504 = vcmp.eq.f32.partialorder %v455, %v468
          %vm505 = vcmp.eq.f32.partialorder %v458, %v468
          %v506 = vsel %vm504, %v502, 16
          %v507 = vsel %vm505, %v503, 16
          %v508 = vsel %vm409, %v506, 2147483647
          %v509 = vsel %vm409, %v507, 2147483647
          %vm510 = vcmp.lt.s32.totalorder %v508, %v509
          %v511 = vsel %vm510, %v508, %v509
          %v512 = vrot.slane %v511, 4
          %vm513 = vcmp.lt.s32.totalorder %v511, %v512
          %v514 = vsel %vm513, %v511, %v512
          %v515 = vrot.slane %v514, 2
          %vm516 = vcmp.lt.s32.totalorder %v514, %v515
          %v517 = vsel %vm516, %v514, %v515
          %v518 = vrot.slane %v517, 1
          %vm519 = vcmp.lt.s32.totalorder %v517, %v518
          %v520 = vsel %vm519, %v517, %v518
          %vm521 = vcmp.lt.s32.totalorder %v520, 15
          %v522 = vsel %vm521, %v520, 15
          %523 = vst.msk [vmem:[#allocation5] sm:$0x1] %vm499, %v522
          %v524 = vand.u32 %v511, 65535
          %v525 = vshra.s32 %v511, 16
          %v526 = vcvt.s32.f32 %v524
          %v527 = vcvt.s32.f32 %v525
          %528 = vmin.xlane.f32.xlu0 %v527
          %v529 = vpop.xlane.xlu0 %528
          %vm530 = vcmp.eq.f32.partialorder %v527, %v529
          %v531 = vsel %vm530, %v526, inf
          %532 = vmin.xlane.f32.xlu0 %v531
          %v533 = vpop.xlane.xlu0 %532
          %v534 = vcvt.f32.s32 %v533
          %v535 = vcvt.f32.s32 %v529
          %v536 = vshll.u32 %v535, 16
          %v537 = vadd.s32 %v536, %v534
          %v538 = vrot.slane %v537, 4
          %vm539 = vcmp.lt.s32.totalorder %v537, %v538
          %v540 = vsel %vm539, %v537, %v538
          %v541 = vrot.slane %v540, 2
          %vm542 = vcmp.lt.s32.totalorder %v540, %v541
          %v543 = vsel %vm542, %v540, %v541
          %v544 = vrot.slane %v543, 1
          %vm545 = vcmp.lt.s32.totalorder %v543, %v544
          %v546 = vsel %vm545, %v543, %v544
          %s547 = vtos %v546
          %p548 = scmp.lt.s32.totalorder %s547, 15
          %s549 = scalar_select %p548, %s547, 15
          %s550 = scalar_lea.vmem %s3, %s549
          %v551 = vld [vmem:[%s550] sm:$0x1]
          %vm552 = vcmask 253952
          %553 = vst.msk [vmem:[#allocation3] sm:$0x1] %vm552, %v551
        $region48: #{tpu_custom_call.1} parent=39 // pred_fallthru
          _
        // Predicated region
        $region49: #{tpu_custom_call.1} parent=39 // pred_check
          %p554 = pneg %p144
        $region50: #{tpu_custom_call.1} parent=39 // pred_check_branch
          %556 = sbr.rel (%p554) target = $region52
        $region51: #{tpu_custom_call.1} parent=39 // pred_region
          %558 = vsyncadd [#allocation4], 0
          %s560 = sshll.u32 [#allocation3], 4
          %s561 = int_to_ptr.vmem [resolvable:$true] %s560
          %s562 = sshll.u32 %s5, 4
          %s563 = int_to_ptr.hbm [resolvable:$true] %s562
          %565 = dma.vmem_to_hbm [thread:$0]  %s561, 16, %s563, [#allocation4]
        $region52: #{tpu_custom_call.1} parent=39 // pred_fallthru
          _
        // Predicated region
        $region53: #{tpu_custom_call.1} parent=39 // pred_check
          %p566 = pneg %p165
        $region54: #{tpu_custom_call.1} parent=39 // pred_check_branch
          %568 = sbr.rel (%p566) target = $region56
        $region55: #{tpu_custom_call.1} parent=39 // pred_region
          %570 = vsyncadd [#allocation6], 0
          %s572 = sshll.u32 [#allocation5], 4
          %s573 = int_to_ptr.vmem [resolvable:$true] %s572
          %s574 = sshll.u32 %s6, 4
          %s575 = int_to_ptr.hbm [resolvable:$true] %s574
          %577 = dma.vmem_to_hbm [thread:$0]  %s573, 16, %s575, [#allocation6]
        $region56: #{tpu_custom_call.1} parent=39 // pred_fallthru
          _
        // Predicated region
        $region57: #{tpu_custom_call.1} parent=39 // pred_check
          %p578 = pneg %p186
        $region58: #{tpu_custom_call.1} parent=39 // pred_check_branch
          %580 = sbr.rel (%p578) target = $region60
        $region59: #{tpu_custom_call.1} parent=39 // pred_region
          %582 = vsyncadd [#allocation6], 0
          %s584 = sshll.u32 [#allocation7], 4
          %s585 = int_to_ptr.vmem [resolvable:$true] %s584
          %s586 = sshll.u32 %s7, 4
          %s587 = int_to_ptr.hbm [resolvable:$true] %s586
          %589 = dma.vmem_to_hbm [thread:$0]  %s585, 16, %s587, [#allocation6]
        $region60: #{tpu_custom_call.1} parent=39 // pred_fallthru
          _
        // Predicated region
        $region61: #{tpu_custom_call.1} parent=39 // pred_check
          %p590 = pneg %p144
        $region62: #{tpu_custom_call.1} parent=39 // pred_check_branch
          %592 = sbr.rel (%p590) target = $region64
        $region63: #{tpu_custom_call.1} parent=39 // pred_region
          %594 = dma.done [#allocation4], 16
        $region64: #{tpu_custom_call.1} parent=39 // pred_fallthru
          _
        // Predicated region
        $region65: #{tpu_custom_call.1} parent=39 // pred_check
          %p595 = pneg %p165
        $region66: #{tpu_custom_call.1} parent=39 // pred_check_branch
          %597 = sbr.rel (%p595) target = $region68
        $region67: #{tpu_custom_call.1} parent=39 // pred_region
          %599 = dma.done [#allocation6], 16
        $region68: #{tpu_custom_call.1} parent=39 // pred_fallthru
          _
        // Predicated region
        $region69: #{tpu_custom_call.1} parent=39 // pred_check
          %p600 = pneg %p186
        $region70: #{tpu_custom_call.1} parent=39 // pred_check_branch
          %602 = sbr.rel (%p600) target = $region72
        $region71: #{tpu_custom_call.1} parent=39 // pred_region
          %604 = dma.done [#allocation6], 16
        $region72: #{tpu_custom_call.1} parent=39 // pred_fallthru
          _
      $region40: #{tpu_custom_call.1} parent=5 // pred_fallthru
        _
      %p605 = scmp.le.s32.totalorder 2, %s16
      // Predicated region
      $region73: #{tpu_custom_call.1} parent=5 // pred_check
        %p606 = pneg %p605
      $region74: #{tpu_custom_call.1} parent=5 // pred_check_branch
        %608 = sbr.rel (%p606) target = $region76
      $region75: #{tpu_custom_call.1} parent=5 // pred_region
        %s609 = ssub.s32 %s16, 2
      $region76: #{tpu_custom_call.1} parent=5 // pred_fallthru
        _
    $region6: #{tpu_custom_call.1} parent=1 // loop_footer
      %s20 = sadd.s32 1, %s16
    $region7: #{tpu_custom_call.1} parent=1 // loop_footer_branch
      %15 = sbr.rel target = $region3
    $region8: #{tpu_custom_call.1} parent=1 // loop_exit
      _
    %610 = vsyncpa [#allocation4], 1
    %s611 = scalar_lea.sflag [#allocation4], 1
    %612 = vsyncpa %s611, 1
    %613 = vsyncpa [#allocation6], 1

</llo_original>
